<compile_context>
chip_gen: v7x
topology: tpu7x:2x2x1
jax: 0.10.0
libtpu: 0.0.40
codegen_flags: <defaults>
</compile_context>

<pallas_src>
import functools

import jax
import jax.numpy as jnp
from jax.experimental import pallas as pl
from jax.experimental.pallas import tpu as pltpu


# ---------------------------------------------------------------------------
# helpers
# ---------------------------------------------------------------------------

def _round_up(x: int, m: int) -> int:
    return ((x + m - 1) // m) * m


def _round_down(x: int, m: int) -> int:
    return (x // m) * m


def _sublane_pack(dtype) -> int:
    """Sublane packing factor: 8 for 4-byte, 16 for 2-byte, 32 for 1-byte."""
    itemsize = jnp.dtype(dtype).itemsize
    return max(8, 32 // max(1, itemsize))


def _device_tuning() -> tuple[int, int]:
    """(per-tile byte target, explicit scoped-VMEM limit) per TPU generation."""
    kind = ""
    try:
        kind = jax.devices()[0].device_kind.lower()
    except Exception:  # pragma: no cover - defensive
        pass
    if "v5" in kind:        # ~820 GB/s HBM, 16 MiB default scoped VMEM
        return 3 << 20, 32 << 20
    if "v6" in kind:        # ~1.4 TB/s HBM
        return 4 << 20, 48 << 20
    if "7" in kind:         # v7x: ~3.2 TB/s HBM/TC, 64 MiB physical VMEM
        return 6 << 20, 48 << 20
    return 4 << 20, 48 << 20


def _pick_row_tile(rows: int, row_bytes: int, pack: int, target: int) -> int:
    """Largest multiple of `pack` whose tile fits `target` bytes (>= pack);
    returns `rows` itself (always a legal block dim) when everything fits."""
    tm_budget = max(pack, _round_down(target // max(1, row_bytes), pack))
    if rows <= tm_budget:
        return rows
    return tm_budget


def _ensure_two_row_tiles(tm: int, rows: int, pack: int) -> int:
    """Cap TM so v7x's two TensorCores get >= 2 parallel grid steps."""
    if tm >= rows and rows >= 2 * pack:
        return _round_up(pl.cdiv(rows, 2), pack)
    return tm


# ---------------------------------------------------------------------------
# kernels
# ---------------------------------------------------------------------------

def _copy_kernel(x_ref, o_ref):
    # Tiled copy; ragged edge blocks are masked by Pallas.
    o_ref[...] = x_ref[...]


def _slice_copy_kernel(x_ref, o_ref, *, l_out: int):
    # Full-row read (contiguous HBM burst), drop the tail in VMEM.
    o_ref[...] = x_ref[:, :l_out]


# ---------------------------------------------------------------------------
# public wrapper
# ---------------------------------------------------------------------------

def cut1d(x: jax.Array, cut_size: int) -> jax.Array:
    """Equivalent of Cut1d(cut_size)(x) for x of shape (N, C, L)."""
    assert x.ndim == 3, "Cut1d expects (N, C, L)"
    n, c, l = x.shape
    assert 0 < cut_size < l, "cut_size must be in (0, L)"
    l_out = l - cut_size

    rows = n * c
    x2 = x.reshape(rows, l)                       # free row-major reshape
    itemsize = jnp.dtype(x.dtype).itemsize
    pack = _sublane_pack(x.dtype)
    tile_target, vmem_limit = _device_tuning()

    cost = pl.CostEstimate(
        flops=0, transcendentals=0,
        bytes_accessed=2 * rows * l_out * itemsize)   # read + write of kept region
    out_shape = jax.ShapeDtypeStruct((rows, l_out), x.dtype)

    if l_out >= 128:
        # --- Tiled copy: (TM, TC) blocks, TC a multiple of 128. ------------
        tc = min(_round_down(l_out, 128), 2048)
        tm = _pick_row_tile(rows, tc * itemsize, pack, tile_target)
        if pl.cdiv(rows, tm) * pl.cdiv(l_out, tc) < 2:
            tm = _ensure_two_row_tiles(tm, rows, pack)
        grid = (pl.cdiv(rows, tm), pl.cdiv(l_out, tc))

        out2 = pl.pallas_call(
            _copy_kernel,
            out_shape=out_shape,
            grid=grid,
            in_specs=[pl.BlockSpec((tm, tc), lambda i, j: (i, j))],
            out_specs=pl.BlockSpec((tm, tc), lambda i, j: (i, j)),
            compiler_params=pltpu.CompilerParams(
                dimension_semantics=("parallel", "parallel"),
                vmem_limit_bytes=vmem_limit),
            cost_estimate=cost,
        )(x2)
    else:
        # --- Small l_out: contiguous full-row reads, slice in VMEM. --------
        tm = _pick_row_tile(rows, l * itemsize, pack, tile_target)
        if pl.cdiv(rows, tm) < 2:
            tm = _ensure_two_row_tiles(tm, rows, pack)
        grid = (pl.cdiv(rows, tm),)

        out2 = pl.pallas_call(
            functools.partial(_slice_copy_kernel, l_out=l_out),
            out_shape=out_shape,
            grid=grid,
            in_specs=[pl.BlockSpec((tm, l), lambda i: (i, 0))],
            out_specs=pl.BlockSpec((tm, l_out), lambda i: (i, 0)),
            compiler_params=pltpu.CompilerParams(
                dimension_semantics=("parallel",),
                vmem_limit_bytes=vmem_limit),
            cost_estimate=cost,
        )(x2)

    return out2.reshape(n, c, l_out)


# ---------------------------------------------------------------------------
# self-test
# ---------------------------------------------------------------------------

if __name__ == "__main__":
    # 1) Small l_out (13 < 128): full-row-read path with in-kernel slice.
    N, C, L, cut = 2, 4, 16, 3
    x = jax.random.normal(jax.random.PRNGKey(0), (N, C, L), dtype=jnp.float32)
    out = jax.block_until_ready(cut1d(x, cut))
    assert out.shape == (N, C, L - cut), out.shape
    assert out.dtype == x.dtype
    assert jnp.array_equal(out, x[:, :, :-cut]), "mismatch (full-row path)"

    # 2) 128-aligned l_out: tiled copy, no over-read.
    x2 = jax.random.normal(jax.random.PRNGKey(1), (2, 4, 256), dtype=jnp.float32)
    out2 = jax.block_until_ready(cut1d(x2, 128))
    assert jnp.array_equal(out2, x2[:, :, :-128]), "mismatch (aligned tiled path)"

    # 3) Non-aligned l_out >= 128: exercises ragged (masked) column blocks.
    x3 = jax.random.normal(jax.random.PRNGKey(2), (2, 4, 200), dtype=jnp.float32)
    out3 = jax.block_until_ready(cut1d(x3, 5))
    assert jnp.array_equal(out3, x3[:, :, :-5]), "mismatch (ragged tiled path)"

    # 4) bf16 (sublane pack = 16), aligned l_out.
    x4 = jax.random.normal(jax.random.PRNGKey(3), (4, 4, 160), dtype=jnp.bfloat16)
    out4 = jax.block_until_ready(cut1d(x4, 32))
    assert jnp.array_equal(out4, x4[:, :, :-32]), "mismatch (bf16 tiled path)"

    print("KERNEL_OK")
</pallas_src>

<mosaic_0001>
module attributes {stable_mosaic.version = 11 : i64} {
  func.func @_slice_copy_kernel(%arg0: i32, %arg1: memref<8x16xf32, #tpu.memory_space<vmem>>, %arg2: memref<8x13xf32, #tpu.memory_space<vmem>>) attributes {dimension_semantics = [#tpu.dimension_semantics<parallel>], iteration_bounds = array<i64: 1>, scalar_prefetch = 0 : i64, scratch_operands = 0 : i64, tpu.core_type = #tpu.core_type<tc>, window_params = [{transform_indices = @transform_0, window_bounds = array<i64: 8, 16>}, {transform_indices = @transform_1, window_bounds = array<i64: 8, 13>}]} {
    %c0 = arith.constant 0 : index
    %c0_0 = arith.constant 0 : index
    %0 = vector.load %arg1[%c0, %c0_0] : memref<8x16xf32, #tpu.memory_space<vmem>>, vector<8x13xf32>
    %c0_1 = arith.constant 0 : index
    %c0_2 = arith.constant 0 : index
    %1 = vector.load %arg2[%c0_1, %c0_2] : memref<8x13xf32, #tpu.memory_space<vmem>>, vector<8x13xf32>
    tpu.vector_store %arg2[%c0_1, %c0_2], %0 {strides = array<i32>} : memref<8x13xf32, #tpu.memory_space<vmem>>, vector<8x13xf32>,
    return
  }
  func.func @transform_0(%arg0: i32) -> (i32, i32) {
    %c0_i32 = arith.constant 0 : i32
    %c0_i32_0 = arith.constant 0 : i32
    return %arg0, %c0_i32 : i32, i32
  }
  func.func @transform_1(%arg0: i32) -> (i32, i32) {
    %c0_i32 = arith.constant 0 : i32
    %c0_i32_0 = arith.constant 0 : i32
    return %arg0, %c0_i32 : i32, i32
  }
}

</mosaic_0001>

<llo_original>
// kernel: tpu_custom_call.1
$region0: #{tpu_custom_call.1}
  #allocation0 [shape = 'u32[]', space=smem, size = 0x4, offset = 0x4, fixed_abs, tag = 'smem constant byte address 0x4 - core index']
  #allocation1 [shape = 'u32[144,128]{1,0:T(1,128)}', space=vmem, size = 0x12000, scoped, tag = 'internal scratch']
  %s0 = inlined_call_operand.hbm [shape: f32[8,16], index: 0, kind: input, shape index: {}]
  %s1 = inlined_call_operand.hbm [shape: f32[8,13], index: 1, kind: output, shape index: {}]
  %s2 = sld [smem:[#allocation0]]
  $region18: #{tpu_custom_call.1} parent=0
    _
  %s4 = ssub.s32 1, %s2
  %s5 = scalar_select 0, %s4, %s2
  $region1: #{tpu_custom_call.1} parent=0
    #allocation2 [shape = 'u8[4096]{0}', space=vmem, size = 0x1000, scoped, tag = 'input window, operand 0, single buffered']
    #allocation3 [shape = 's32[1]{0}', space=sflag, size = 0x4, scoped, tag = 'scoped memory for tpu_custom_call.1']
    #allocation4 [shape = 's32[1]{0}', space=sflag, size = 0x4, scoped, tag = 'scoped memory for tpu_custom_call.1']
    #allocation5 [shape = 'u8[4096]{0}', space=vmem, size = 0x1000, scoped, tag = 'output window, operand 0, single buffered']
    %6 = vsyncpa [#allocation3], 0
    %7 = vsyncpa [#allocation4], 0
    // Predicated region
    $region2: #{tpu_custom_call.1} parent=1 // pred_check
      _
    $region3: #{tpu_custom_call.1} parent=1 // pred_check_branch
      %9 = sbr.rel (0) target = $region5
    $region4: #{tpu_custom_call.1} parent=1 // pred_region
      %s11 = ssub.s32 128, 128
      %12 = vsyncadd [#allocation3], %s11
      %s14 = sshll.u32 [#allocation2], 4
      %s15 = int_to_ptr.vmem [resolvable:$true] %s14
      %17 = dma.hbm_to_vmem [thread:$0]  %s0, 128, %s15, [#allocation3]
    $region5: #{tpu_custom_call.1} parent=1 // pred_fallthru
      _
    // Predicated region
    $region6: #{tpu_custom_call.1} parent=1 // pred_check
      _
    $region7: #{tpu_custom_call.1} parent=1 // pred_check_branch
      %19 = sbr.rel (0) target = $region9
    $region8: #{tpu_custom_call.1} parent=1 // pred_region
      %20 = dma.done [#allocation3], 128
    $region9: #{tpu_custom_call.1} parent=1 // pred_fallthru
      _
    %v21 = vld [vmem:[#allocation2] sm:$0xff]
    %vm22 = vcmask 105472
    %23 = vst.msk [vmem:[#allocation5] sm:$0xff] %vm22, %v21
    // Predicated region
    $region10: #{tpu_custom_call.1} parent=1 // pred_check
      _
    $region11: #{tpu_custom_call.1} parent=1 // pred_check_branch
      %25 = sbr.rel (0) target = $region13
    $region12: #{tpu_custom_call.1} parent=1 // pred_region
      %s27 = ssub.s32 128, 128
      %28 = vsyncadd [#allocation4], %s27
      %s30 = sshll.u32 [#allocation5], 4
      %s31 = int_to_ptr.vmem [resolvable:$true] %s30
      %33 = dma.vmem_to_hbm [thread:$0]  %s31, 128, %s1, [#allocation4]
    $region13: #{tpu_custom_call.1} parent=1 // pred_fallthru
      _
    // Predicated region
    $region14: #{tpu_custom_call.1} parent=1 // pred_check
      _
    $region15: #{tpu_custom_call.1} parent=1 // pred_check_branch
      %35 = sbr.rel (0) target = $region17
    $region16: #{tpu_custom_call.1} parent=1 // pred_region
      %36 = dma.done [#allocation4], 128
    $region17: #{tpu_custom_call.1} parent=1 // pred_fallthru
      _
    %37 = vsyncpa [#allocation3], 1
    %38 = vsyncpa [#allocation4], 1

</llo_original>
